<compile_context>
chip_gen: v5e
topology: v5e:2x2
jax: 0.10.0
libtpu: 0.0.40
codegen_flags: <defaults>
</compile_context>

<pallas_src>
import jax
import jax.numpy as jnp
from jax.experimental import pallas as pl
from jax.experimental.pallas import tpu as pltpu


def make_cann_kernel(prcn, alpha, beta, k):
    ab = alpha * beta  # fused loop-invariant constant

    def kernel(jT_ref, iext_ref, r0_ref, u_ref, recsum_ref, r_ref):
        jT = jT_ref[...]                         # (N, N) bf16 = J^T
        alpha_iext = alpha * iext_ref[...]       # hoisted loop invariant, (1, N) f32

        # Defaults in case prcn < 2 (matches previous behavior: zeros).
        net_U = jnp.zeros_like(alpha_iext)
        rs = jnp.zeros((1, 1), jnp.float32)
        net_r = r0_ref[...]                      # (1, N) f32
        r_bf16 = net_r.astype(jnp.bfloat16)

        # Fully unrolled fixed-trip recurrence (prcn is a compile-time constant).
        for _ in range(1, prcn):
            # J @ r  ==  r_row @ J^T  (the 4-way chunked mm + cat in the
            # reference is mathematically identical to one mm).
            temp = jnp.dot(r_bf16, jT,
                           preferred_element_type=jnp.float32)       # (1, N) f32
            net_U = ab * temp + alpha_iext
            buf_2 = jnp.square(0.2 * net_U)                           # computed once
            rs = k * jnp.sum(buf_2, axis=-1, keepdims=True)           # (1, 1) recSum
            # EUP approximate reciprocal + one Newton step instead of a divide;
            # buf_2 * (0.04/recSum) / 0.04  ==  buf_2 / recSum.
            inv = pl.reciprocal(rs, approx=True)
            inv = inv * (2.0 - rs * inv)
            net_r = buf_2 * inv
            r_bf16 = net_r.astype(jnp.bfloat16)

        u_ref[...] = net_U
        recsum_ref[...] = rs
        r_ref[...] = net_r

    return kernel


def prepare_cann_weights(J):
    """Hoisted out of the per-call path: J is a constant weight, so the
    transpose + bf16 cast (MXU-native dtype, half the HBM->VMEM DMA) is done
    once at model init."""
    return jnp.transpose(jnp.asarray(J, jnp.float32)).astype(jnp.bfloat16)


def cann_forward(jT_bf16, net_in, *, num_rows, num_cols,
                 k=0.005, prcn=15, alpha=1.0, beta=1.0):
    N = num_rows * num_cols
    net_Iext = net_in[0:N].reshape(1, N).astype(jnp.float32)
    net_r0 = net_in[N:2 * N].reshape(1, N).astype(jnp.float32)

    kernel = make_cann_kernel(prcn, float(alpha), float(beta), float(k))
    vmem = pl.BlockSpec(memory_space=pltpu.MemorySpace.VMEM)

    net_U, net_recSum, net_r = pl.pallas_call(
        kernel,
        out_shape=(
            jax.ShapeDtypeStruct((1, N), jnp.float32),   # net_U
            jax.ShapeDtypeStruct((1, 1), jnp.float32),   # net_recSum
            jax.ShapeDtypeStruct((1, N), jnp.float32),   # net_r
        ),
        in_specs=[vmem, vmem, vmem],
        out_specs=(vmem, vmem, vmem),
    )(jT_bf16, net_Iext, net_r0)

    return (net_U.reshape(num_rows, num_cols),
            net_recSum[0, 0],
            net_r.reshape(num_rows, num_cols))


def cann_reference(J, net_in, *, num_rows, num_cols,
                   k=0.005, prcn=15, alpha=1.0, beta=1.0):
    """Pure-JAX transcription of the PyTorch forward, using the same matmul
    precision policy as the kernel (bf16 operands, f32 accumulation)."""
    N = num_rows * num_cols
    net_Iext = net_in[0:N].reshape(num_rows, num_cols).astype(jnp.float32)
    net_r = net_in[N:2 * N].reshape(num_rows, num_cols).astype(jnp.float32)
    J_bf16 = jnp.asarray(J, jnp.float32).astype(jnp.bfloat16)
    net_U = jnp.zeros_like(net_Iext)
    net_recSum = jnp.zeros((), jnp.float32)
    for _ in range(1, prcn):
        buf_1 = net_r.reshape(N, 1).astype(jnp.bfloat16)
        temp = jnp.dot(J_bf16, buf_1,
                       preferred_element_type=jnp.float32).reshape(num_rows, num_cols)
        net_U = alpha * (beta * temp) + alpha * net_Iext
        buf_2 = jnp.square(0.2 * net_U.reshape(N, 1))
        net_recSum = jnp.sum(k * buf_2)
        buf_3 = 0.04 / net_recSum
        net_r = jnp.square(0.2 * net_U) * buf_3 / 0.04
    return net_U, net_recSum, net_r


if __name__ == "__main__":
    # Small shapes consistent with the module's forward:
    # NumOfNeRow=8, NumOfNeCol=16 -> N=128 neurons, net_in has length 2*N.
    num_rows, num_cols = 8, 16
    N = num_rows * num_cols
    k, prcn = 0.005, 15

    key = jax.random.PRNGKey(0)
    kJ, kin = jax.random.split(key)
    # Deterministic synthetic weight (stands in for weightMatrixAll_Convert.mat)
    J = 0.05 * jax.random.normal(kJ, (N, N), dtype=jnp.float32)
    net_in = jax.random.normal(kin, (2 * N,), dtype=jnp.float32)

    # Weight prep (transpose + bf16) done once at init, not per forward call.
    jT_bf16 = prepare_cann_weights(J)

    net_U, net_recSum, net_r = cann_forward(
        jT_bf16, net_in, num_rows=num_rows, num_cols=num_cols, k=k, prcn=prcn)
    jax.block_until_ready((net_U, net_recSum, net_r))

    ref_U, ref_recSum, ref_r = cann_reference(
        J, net_in, num_rows=num_rows, num_cols=num_cols, k=k, prcn=prcn)
    jax.block_until_ready((ref_U, ref_recSum, ref_r))

    assert net_U.shape == (num_rows, num_cols)
    assert net_r.shape == (num_rows, num_cols)
    # Tolerances account for the approximate-reciprocal + accumulation-order
    # differences between the Pallas MXU path and the XLA reference dot.
    assert jnp.allclose(net_U, ref_U, rtol=5e-3, atol=5e-4)
    assert jnp.allclose(net_recSum, ref_recSum, rtol=5e-3, atol=5e-4)
    assert jnp.allclose(net_r, ref_r, rtol=5e-3, atol=5e-4)

    print("KERNEL_OK")
</pallas_src>

<mosaic_0001>
module attributes {stable_mosaic.version = 11 : i64} {
  func.func @kernel(%arg0: memref<128x128xbf16, #tpu.memory_space<vmem>>, %arg1: memref<1x128xf32, #tpu.memory_space<vmem>>, %arg2: memref<1x128xf32, #tpu.memory_space<vmem>>, %arg3: memref<1x128xf32, #tpu.memory_space<vmem>>, %arg4: memref<1x1xf32, #tpu.memory_space<vmem>>, %arg5: memref<1x128xf32, #tpu.memory_space<vmem>>) attributes {dimension_semantics = [], scalar_prefetch = 0 : i64, scratch_operands = 0 : i64, tpu.core_type = #tpu.core_type<tc>} {
    %c0 = arith.constant 0 : index
    %c0_0 = arith.constant 0 : index
    %0 = vector.load %arg0[%c0, %c0_0] : memref<128x128xbf16, #tpu.memory_space<vmem>>, vector<128x128xbf16>
    %c0_1 = arith.constant 0 : index
    %c0_2 = arith.constant 0 : index
    %1 = vector.load %arg1[%c0_1, %c0_2] : memref<1x128xf32, #tpu.memory_space<vmem>>, vector<1x128xf32>
    %cst = arith.constant 1.000000e+00 : f32
    %2 = vector.broadcast %cst : f32 to vector<1x128xf32>
    %3 = arith.mulf %2, %1 : vector<1x128xf32>
    %c0_3 = arith.constant 0 : index
    %c0_4 = arith.constant 0 : index
    %4 = vector.load %arg2[%c0_3, %c0_4] : memref<1x128xf32, #tpu.memory_space<vmem>>, vector<1x128xf32>
    %5 = arith.truncf %4 : vector<1x128xf32> to vector<1x128xbf16>
    %cst_5 = arith.constant dense<0.000000e+00> : vector<1x128xf32>
    %6 = tpu.matmul %5, %0, %cst_5 {dimension_numbers = #tpu.dot_dimension_numbers<[1], [0], [0], [1], [0, 0, 1, 1], [], []>} : vector<1x128xbf16>, vector<128x128xbf16>, vector<1x128xf32> -> vector<1x128xf32>
    %cst_6 = arith.constant 1.000000e+00 : f32
    %7 = vector.broadcast %cst_6 : f32 to vector<1x128xf32>
    %8 = arith.mulf %7, %6 : vector<1x128xf32>
    %9 = arith.addf %8, %3 : vector<1x128xf32>
    %cst_7 = arith.constant 2.000000e-01 : f32
    %10 = vector.broadcast %cst_7 : f32 to vector<1x128xf32>
    %11 = arith.mulf %10, %9 : vector<1x128xf32>
    %12 = arith.mulf %11, %11 : vector<1x128xf32>
    %cst_8 = arith.constant dense<0.000000e+00> : vector<1xf32>
    %13 = vector.multi_reduction <add>, %12, %cst_8 [1] : vector<1x128xf32> to vector<1xf32>
    %14 = vector.shape_cast %13 : vector<1xf32> to vector<1x1xf32>
    %cst_9 = arith.constant 5.000000e-03 : f32
    %15 = vector.broadcast %cst_9 : f32 to vector<1x1xf32>
    %16 = arith.mulf %15, %14 : vector<1x1xf32>
    %17 = tpu.reciprocal %16 {approx = true} : vector<1x1xf32> -> vector<1x1xf32>
    %18 = arith.mulf %16, %17 : vector<1x1xf32>
    %cst_10 = arith.constant 2.000000e+00 : f32
    %19 = vector.broadcast %cst_10 : f32 to vector<1x1xf32>
    %20 = arith.subf %19, %18 : vector<1x1xf32>
    %21 = arith.mulf %17, %20 : vector<1x1xf32>
    %22 = vector.broadcast %21 : vector<1x1xf32> to vector<1x128xf32>
    %23 = arith.mulf %12, %22 : vector<1x128xf32>
    %24 = arith.truncf %23 : vector<1x128xf32> to vector<1x128xbf16>
    %cst_11 = arith.constant dense<0.000000e+00> : vector<1x128xf32>
    %25 = tpu.matmul %24, %0, %cst_11 {dimension_numbers = #tpu.dot_dimension_numbers<[1], [0], [0], [1], [0, 0, 1, 1], [], []>} : vector<1x128xbf16>, vector<128x128xbf16>, vector<1x128xf32> -> vector<1x128xf32>
    %cst_12 = arith.constant 1.000000e+00 : f32
    %26 = vector.broadcast %cst_12 : f32 to vector<1x128xf32>
    %27 = arith.mulf %26, %25 : vector<1x128xf32>
    %28 = arith.addf %27, %3 : vector<1x128xf32>
    %cst_13 = arith.constant 2.000000e-01 : f32
    %29 = vector.broadcast %cst_13 : f32 to vector<1x128xf32>
    %30 = arith.mulf %29, %28 : vector<1x128xf32>
    %31 = arith.mulf %30, %30 : vector<1x128xf32>
    %cst_14 = arith.constant dense<0.000000e+00> : vector<1xf32>
    %32 = vector.multi_reduction <add>, %31, %cst_14 [1] : vector<1x128xf32> to vector<1xf32>
    %33 = vector.shape_cast %32 : vector<1xf32> to vector<1x1xf32>
    %cst_15 = arith.constant 5.000000e-03 : f32
    %34 = vector.broadcast %cst_15 : f32 to vector<1x1xf32>
    %35 = arith.mulf %34, %33 : vector<1x1xf32>
    %36 = tpu.reciprocal %35 {approx = true} : vector<1x1xf32> -> vector<1x1xf32>
    %37 = arith.mulf %35, %36 : vector<1x1xf32>
    %cst_16 = arith.constant 2.000000e+00 : f32
    %38 = vector.broadcast %cst_16 : f32 to vector<1x1xf32>
    %39 = arith.subf %38, %37 : vector<1x1xf32>
    %40 = arith.mulf %36, %39 : vector<1x1xf32>
    %41 = vector.broadcast %40 : vector<1x1xf32> to vector<1x128xf32>
    %42 = arith.mulf %31, %41 : vector<1x128xf32>
    %43 = arith.truncf %42 : vector<1x128xf32> to vector<1x128xbf16>
    %cst_17 = arith.constant dense<0.000000e+00> : vector<1x128xf32>
    %44 = tpu.matmul %43, %0, %cst_17 {dimension_numbers = #tpu.dot_dimension_numbers<[1], [0], [0], [1], [0, 0, 1, 1], [], []>} : vector<1x128xbf16>, vector<128x128xbf16>, vector<1x128xf32> -> vector<1x128xf32>
    %cst_18 = arith.constant 1.000000e+00 : f32
    %45 = vector.broadcast %cst_18 : f32 to vector<1x128xf32>
    %46 = arith.mulf %45, %44 : vector<1x128xf32>
    %47 = arith.addf %46, %3 : vector<1x128xf32>
    %cst_19 = arith.constant 2.000000e-01 : f32
    %48 = vector.broadcast %cst_19 : f32 to vector<1x128xf32>
    %49 = arith.mulf %48, %47 : vector<1x128xf32>
    %50 = arith.mulf %49, %49 : vector<1x128xf32>
    %cst_20 = arith.constant dense<0.000000e+00> : vector<1xf32>
    %51 = vector.multi_reduction <add>, %50, %cst_20 [1] : vector<1x128xf32> to vector<1xf32>
    %52 = vector.shape_cast %51 : vector<1xf32> to vector<1x1xf32>
    %cst_21 = arith.constant 5.000000e-03 : f32
    %53 = vector.broadcast %cst_21 : f32 to vector<1x1xf32>
    %54 = arith.mulf %53, %52 : vector<1x1xf32>
    %55 = tpu.reciprocal %54 {approx = true} : vector<1x1xf32> -> vector<1x1xf32>
    %56 = arith.mulf %54, %55 : vector<1x1xf32>
    %cst_22 = arith.constant 2.000000e+00 : f32
    %57 = vector.broadcast %cst_22 : f32 to vector<1x1xf32>
    %58 = arith.subf %57, %56 : vector<1x1xf32>
    %59 = arith.mulf %55, %58 : vector<1x1xf32>
    %60 = vector.broadcast %59 : vector<1x1xf32> to vector<1x128xf32>
    %61 = arith.mulf %50, %60 : vector<1x128xf32>
    %62 = arith.truncf %61 : vector<1x128xf32> to vector<1x128xbf16>
    %cst_23 = arith.constant dense<0.000000e+00> : vector<1x128xf32>
    %63 = tpu.matmul %62, %0, %cst_23 {dimension_numbers = #tpu.dot_dimension_numbers<[1], [0], [0], [1], [0, 0, 1, 1], [], []>} : vector<1x128xbf16>, vector<128x128xbf16>, vector<1x128xf32> -> vector<1x128xf32>
    %cst_24 = arith.constant 1.000000e+00 : f32
    %64 = vector.broadcast %cst_24 : f32 to vector<1x128xf32>
    %65 = arith.mulf %64, %63 : vector<1x128xf32>
    %66 = arith.addf %65, %3 : vector<1x128xf32>
    %cst_25 = arith.constant 2.000000e-01 : f32
    %67 = vector.broadcast %cst_25 : f32 to vector<1x128xf32>
    %68 = arith.mulf %67, %66 : vector<1x128xf32>
    %69 = arith.mulf %68, %68 : vector<1x128xf32>
    %cst_26 = arith.constant dense<0.000000e+00> : vector<1xf32>
    %70 = vector.multi_reduction <add>, %69, %cst_26 [1] : vector<1x128xf32> to vector<1xf32>
    %71 = vector.shape_cast %70 : vector<1xf32> to vector<1x1xf32>
    %cst_27 = arith.constant 5.000000e-03 : f32
    %72 = vector.broadcast %cst_27 : f32 to vector<1x1xf32>
    %73 = arith.mulf %72, %71 : vector<1x1xf32>
    %74 = tpu.reciprocal %73 {approx = true} : vector<1x1xf32> -> vector<1x1xf32>
    %75 = arith.mulf %73, %74 : vector<1x1xf32>
    %cst_28 = arith.constant 2.000000e+00 : f32
    %76 = vector.broadcast %cst_28 : f32 to vector<1x1xf32>
    %77 = arith.subf %76, %75 : vector<1x1xf32>
    %78 = arith.mulf %74, %77 : vector<1x1xf32>
    %79 = vector.broadcast %78 : vector<1x1xf32> to vector<1x128xf32>
    %80 = arith.mulf %69, %79 : vector<1x128xf32>
    %81 = arith.truncf %80 : vector<1x128xf32> to vector<1x128xbf16>
    %cst_29 = arith.constant dense<0.000000e+00> : vector<1x128xf32>
    %82 = tpu.matmul %81, %0, %cst_29 {dimension_numbers = #tpu.dot_dimension_numbers<[1], [0], [0], [1], [0, 0, 1, 1], [], []>} : vector<1x128xbf16>, vector<128x128xbf16>, vector<1x128xf32> -> vector<1x128xf32>
    %cst_30 = arith.constant 1.000000e+00 : f32
    %83 = vector.broadcast %cst_30 : f32 to vector<1x128xf32>
    %84 = arith.mulf %83, %82 : vector<1x128xf32>
    %85 = arith.addf %84, %3 : vector<1x128xf32>
    %cst_31 = arith.constant 2.000000e-01 : f32
    %86 = vector.broadcast %cst_31 : f32 to vector<1x128xf32>
    %87 = arith.mulf %86, %85 : vector<1x128xf32>
    %88 = arith.mulf %87, %87 : vector<1x128xf32>
    %cst_32 = arith.constant dense<0.000000e+00> : vector<1xf32>
    %89 = vector.multi_reduction <add>, %88, %cst_32 [1] : vector<1x128xf32> to vector<1xf32>
    %90 = vector.shape_cast %89 : vector<1xf32> to vector<1x1xf32>
    %cst_33 = arith.constant 5.000000e-03 : f32
    %91 = vector.broadcast %cst_33 : f32 to vector<1x1xf32>
    %92 = arith.mulf %91, %90 : vector<1x1xf32>
    %93 = tpu.reciprocal %92 {approx = true} : vector<1x1xf32> -> vector<1x1xf32>
    %94 = arith.mulf %92, %93 : vector<1x1xf32>
    %cst_34 = arith.constant 2.000000e+00 : f32
    %95 = vector.broadcast %cst_34 : f32 to vector<1x1xf32>
    %96 = arith.subf %95, %94 : vector<1x1xf32>
    %97 = arith.mulf %93, %96 : vector<1x1xf32>
    %98 = vector.broadcast %97 : vector<1x1xf32> to vector<1x128xf32>
    %99 = arith.mulf %88, %98 : vector<1x128xf32>
    %100 = arith.truncf %99 : vector<1x128xf32> to vector<1x128xbf16>
    %cst_35 = arith.constant dense<0.000000e+00> : vector<1x128xf32>
    %101 = tpu.matmul %100, %0, %cst_35 {dimension_numbers = #tpu.dot_dimension_numbers<[1], [0], [0], [1], [0, 0, 1, 1], [], []>} : vector<1x128xbf16>, vector<128x128xbf16>, vector<1x128xf32> -> vector<1x128xf32>
    %cst_36 = arith.constant 1.000000e+00 : f32
    %102 = vector.broadcast %cst_36 : f32 to vector<1x128xf32>
    %103 = arith.mulf %102, %101 : vector<1x128xf32>
    %104 = arith.addf %103, %3 : vector<1x128xf32>
    %cst_37 = arith.constant 2.000000e-01 : f32
    %105 = vector.broadcast %cst_37 : f32 to vector<1x128xf32>
    %106 = arith.mulf %105, %104 : vector<1x128xf32>
    %107 = arith.mulf %106, %106 : vector<1x128xf32>
    %cst_38 = arith.constant dense<0.000000e+00> : vector<1xf32>
    %108 = vector.multi_reduction <add>, %107, %cst_38 [1] : vector<1x128xf32> to vector<1xf32>
    %109 = vector.shape_cast %108 : vector<1xf32> to vector<1x1xf32>
    %cst_39 = arith.constant 5.000000e-03 : f32
    %110 = vector.broadcast %cst_39 : f32 to vector<1x1xf32>
    %111 = arith.mulf %110, %109 : vector<1x1xf32>
    %112 = tpu.reciprocal %111 {approx = true} : vector<1x1xf32> -> vector<1x1xf32>
    %113 = arith.mulf %111, %112 : vector<1x1xf32>
    %cst_40 = arith.constant 2.000000e+00 : f32
    %114 = vector.broadcast %cst_40 : f32 to vector<1x1xf32>
    %115 = arith.subf %114, %113 : vector<1x1xf32>
    %116 = arith.mulf %112, %115 : vector<1x1xf32>
    %117 = vector.broadcast %116 : vector<1x1xf32> to vector<1x128xf32>
    %118 = arith.mulf %107, %117 : vector<1x128xf32>
    %119 = arith.truncf %118 : vector<1x128xf32> to vector<1x128xbf16>
    %cst_41 = arith.constant dense<0.000000e+00> : vector<1x128xf32>
    %120 = tpu.matmul %119, %0, %cst_41 {dimension_numbers = #tpu.dot_dimension_numbers<[1], [0], [0], [1], [0, 0, 1, 1], [], []>} : vector<1x128xbf16>, vector<128x128xbf16>, vector<1x128xf32> -> vector<1x128xf32>
    %cst_42 = arith.constant 1.000000e+00 : f32
    %121 = vector.broadcast %cst_42 : f32 to vector<1x128xf32>
    %122 = arith.mulf %121, %120 : vector<1x128xf32>
    %123 = arith.addf %122, %3 : vector<1x128xf32>
    %cst_43 = arith.constant 2.000000e-01 : f32
    %124 = vector.broadcast %cst_43 : f32 to vector<1x128xf32>
    %125 = arith.mulf %124, %123 : vector<1x128xf32>
    %126 = arith.mulf %125, %125 : vector<1x128xf32>
    %cst_44 = arith.constant dense<0.000000e+00> : vector<1xf32>
    %127 = vector.multi_reduction <add>, %126, %cst_44 [1] : vector<1x128xf32> to vector<1xf32>
    %128 = vector.shape_cast %127 : vector<1xf32> to vector<1x1xf32>
    %cst_45 = arith.constant 5.000000e-03 : f32
    %129 = vector.broadcast %cst_45 : f32 to vector<1x1xf32>
    %130 = arith.mulf %129, %128 : vector<1x1xf32>
    %131 = tpu.reciprocal %130 {approx = true} : vector<1x1xf32> -> vector<1x1xf32>
    %132 = arith.mulf %130, %131 : vector<1x1xf32>
    %cst_46 = arith.constant 2.000000e+00 : f32
    %133 = vector.broadcast %cst_46 : f32 to vector<1x1xf32>
    %134 = arith.subf %133, %132 : vector<1x1xf32>
    %135 = arith.mulf %131, %134 : vector<1x1xf32>
    %136 = vector.broadcast %135 : vector<1x1xf32> to vector<1x128xf32>
    %137 = arith.mulf %126, %136 : vector<1x128xf32>
    %138 = arith.truncf %137 : vector<1x128xf32> to vector<1x128xbf16>
    %cst_47 = arith.constant dense<0.000000e+00> : vector<1x128xf32>
    %139 = tpu.matmul %138, %0, %cst_47 {dimension_numbers = #tpu.dot_dimension_numbers<[1], [0], [0], [1], [0, 0, 1, 1], [], []>} : vector<1x128xbf16>, vector<128x128xbf16>, vector<1x128xf32> -> vector<1x128xf32>
    %cst_48 = arith.constant 1.000000e+00 : f32
    %140 = vector.broadcast %cst_48 : f32 to vector<1x128xf32>
    %141 = arith.mulf %140, %139 : vector<1x128xf32>
    %142 = arith.addf %141, %3 : vector<1x128xf32>
    %cst_49 = arith.constant 2.000000e-01 : f32
    %143 = vector.broadcast %cst_49 : f32 to vector<1x128xf32>
    %144 = arith.mulf %143, %142 : vector<1x128xf32>
    %145 = arith.mulf %144, %144 : vector<1x128xf32>
    %cst_50 = arith.constant dense<0.000000e+00> : vector<1xf32>
    %146 = vector.multi_reduction <add>, %145, %cst_50 [1] : vector<1x128xf32> to vector<1xf32>
    %147 = vector.shape_cast %146 : vector<1xf32> to vector<1x1xf32>
    %cst_51 = arith.constant 5.000000e-03 : f32
    %148 = vector.broadcast %cst_51 : f32 to vector<1x1xf32>
    %149 = arith.mulf %148, %147 : vector<1x1xf32>
    %150 = tpu.reciprocal %149 {approx = true} : vector<1x1xf32> -> vector<1x1xf32>
    %151 = arith.mulf %149, %150 : vector<1x1xf32>
    %cst_52 = arith.constant 2.000000e+00 : f32
    %152 = vector.broadcast %cst_52 : f32 to vector<1x1xf32>
    %153 = arith.subf %152, %151 : vector<1x1xf32>
    %154 = arith.mulf %150, %153 : vector<1x1xf32>
    %155 = vector.broadcast %154 : vector<1x1xf32> to vector<1x128xf32>
    %156 = arith.mulf %145, %155 : vector<1x128xf32>
    %157 = arith.truncf %156 : vector<1x128xf32> to vector<1x128xbf16>
    %cst_53 = arith.constant dense<0.000000e+00> : vector<1x128xf32>
    %158 = tpu.matmul %157, %0, %cst_53 {dimension_numbers = #tpu.dot_dimension_numbers<[1], [0], [0], [1], [0, 0, 1, 1], [], []>} : vector<1x128xbf16>, vector<128x128xbf16>, vector<1x128xf32> -> vector<1x128xf32>
    %cst_54 = arith.constant 1.000000e+00 : f32
    %159 = vector.broadcast %cst_54 : f32 to vector<1x128xf32>
    %160 = arith.mulf %159, %158 : vector<1x128xf32>
    %161 = arith.addf %160, %3 : vector<1x128xf32>
    %cst_55 = arith.constant 2.000000e-01 : f32
    %162 = vector.broadcast %cst_55 : f32 to vector<1x128xf32>
    %163 = arith.mulf %162, %161 : vector<1x128xf32>
    %164 = arith.mulf %163, %163 : vector<1x128xf32>
    %cst_56 = arith.constant dense<0.000000e+00> : vector<1xf32>
    %165 = vector.multi_reduction <add>, %164, %cst_56 [1] : vector<1x128xf32> to vector<1xf32>
    %166 = vector.shape_cast %165 : vector<1xf32> to vector<1x1xf32>
    %cst_57 = arith.constant 5.000000e-03 : f32
    %167 = vector.broadcast %cst_57 : f32 to vector<1x1xf32>
    %168 = arith.mulf %167, %166 : vector<1x1xf32>
    %169 = tpu.reciprocal %168 {approx = true} : vector<1x1xf32> -> vector<1x1xf32>
    %170 = arith.mulf %168, %169 : vector<1x1xf32>
    %cst_58 = arith.constant 2.000000e+00 : f32
    %171 = vector.broadcast %cst_58 : f32 to vector<1x1xf32>
    %172 = arith.subf %171, %170 : vector<1x1xf32>
    %173 = arith.mulf %169, %172 : vector<1x1xf32>
    %174 = vector.broadcast %173 : vector<1x1xf32> to vector<1x128xf32>
    %175 = arith.mulf %164, %174 : vector<1x128xf32>
    %176 = arith.truncf %175 : vector<1x128xf32> to vector<1x128xbf16>
    %cst_59 = arith.constant dense<0.000000e+00> : vector<1x128xf32>
    %177 = tpu.matmul %176, %0, %cst_59 {dimension_numbers = #tpu.dot_dimension_numbers<[1], [0], [0], [1], [0, 0, 1, 1], [], []>} : vector<1x128xbf16>, vector<128x128xbf16>, vector<1x128xf32> -> vector<1x128xf32>
    %cst_60 = arith.constant 1.000000e+00 : f32
    %178 = vector.broadcast %cst_60 : f32 to vector<1x128xf32>
    %179 = arith.mulf %178, %177 : vector<1x128xf32>
    %180 = arith.addf %179, %3 : vector<1x128xf32>
    %cst_61 = arith.constant 2.000000e-01 : f32
    %181 = vector.broadcast %cst_61 : f32 to vector<1x128xf32>
    %182 = arith.mulf %181, %180 : vector<1x128xf32>
    %183 = arith.mulf %182, %182 : vector<1x128xf32>
    %cst_62 = arith.constant dense<0.000000e+00> : vector<1xf32>
    %184 = vector.multi_reduction <add>, %183, %cst_62 [1] : vector<1x128xf32> to vector<1xf32>
    %185 = vector.shape_cast %184 : vector<1xf32> to vector<1x1xf32>
    %cst_63 = arith.constant 5.000000e-03 : f32
    %186 = vector.broadcast %cst_63 : f32 to vector<1x1xf32>
    %187 = arith.mulf %186, %185 : vector<1x1xf32>
    %188 = tpu.reciprocal %187 {approx = true} : vector<1x1xf32> -> vector<1x1xf32>
    %189 = arith.mulf %187, %188 : vector<1x1xf32>
    %cst_64 = arith.constant 2.000000e+00 : f32
    %190 = vector.broadcast %cst_64 : f32 to vector<1x1xf32>
    %191 = arith.subf %190, %189 : vector<1x1xf32>
    %192 = arith.mulf %188, %191 : vector<1x1xf32>
    %193 = vector.broadcast %192 : vector<1x1xf32> to vector<1x128xf32>
    %194 = arith.mulf %183, %193 : vector<1x128xf32>
    %195 = arith.truncf %194 : vector<1x128xf32> to vector<1x128xbf16>
    %cst_65 = arith.constant dense<0.000000e+00> : vector<1x128xf32>
    %196 = tpu.matmul %195, %0, %cst_65 {dimension_numbers = #tpu.dot_dimension_numbers<[1], [0], [0], [1], [0, 0, 1, 1], [], []>} : vector<1x128xbf16>, vector<128x128xbf16>, vector<1x128xf32> -> vector<1x128xf32>
    %cst_66 = arith.constant 1.000000e+00 : f32
    %197 = vector.broadcast %cst_66 : f32 to vector<1x128xf32>
    %198 = arith.mulf %197, %196 : vector<1x128xf32>
    %199 = arith.addf %198, %3 : vector<1x128xf32>
    %cst_67 = arith.constant 2.000000e-01 : f32
    %200 = vector.broadcast %cst_67 : f32 to vector<1x128xf32>
    %201 = arith.mulf %200, %199 : vector<1x128xf32>
    %202 = arith.mulf %201, %201 : vector<1x128xf32>
    %cst_68 = arith.constant dense<0.000000e+00> : vector<1xf32>
    %203 = vector.multi_reduction <add>, %202, %cst_68 [1] : vector<1x128xf32> to vector<1xf32>
    %204 = vector.shape_cast %203 : vector<1xf32> to vector<1x1xf32>
    %cst_69 = arith.constant 5.000000e-03 : f32
    %205 = vector.broadcast %cst_69 : f32 to vector<1x1xf32>
    %206 = arith.mulf %205, %204 : vector<1x1xf32>
    %207 = tpu.reciprocal %206 {approx = true} : vector<1x1xf32> -> vector<1x1xf32>
    %208 = arith.mulf %206, %207 : vector<1x1xf32>
    %cst_70 = arith.constant 2.000000e+00 : f32
    %209 = vector.broadcast %cst_70 : f32 to vector<1x1xf32>
    %210 = arith.subf %209, %208 : vector<1x1xf32>
    %211 = arith.mulf %207, %210 : vector<1x1xf32>
    %212 = vector.broadcast %211 : vector<1x1xf32> to vector<1x128xf32>
    %213 = arith.mulf %202, %212 : vector<1x128xf32>
    %214 = arith.truncf %213 : vector<1x128xf32> to vector<1x128xbf16>
    %cst_71 = arith.constant dense<0.000000e+00> : vector<1x128xf32>
    %215 = tpu.matmul %214, %0, %cst_71 {dimension_numbers = #tpu.dot_dimension_numbers<[1], [0], [0], [1], [0, 0, 1, 1], [], []>} : vector<1x128xbf16>, vector<128x128xbf16>, vector<1x128xf32> -> vector<1x128xf32>
    %cst_72 = arith.constant 1.000000e+00 : f32
    %216 = vector.broadcast %cst_72 : f32 to vector<1x128xf32>
    %217 = arith.mulf %216, %215 : vector<1x128xf32>
    %218 = arith.addf %217, %3 : vector<1x128xf32>
    %cst_73 = arith.constant 2.000000e-01 : f32
    %219 = vector.broadcast %cst_73 : f32 to vector<1x128xf32>
    %220 = arith.mulf %219, %218 : vector<1x128xf32>
    %221 = arith.mulf %220, %220 : vector<1x128xf32>
    %cst_74 = arith.constant dense<0.000000e+00> : vector<1xf32>
    %222 = vector.multi_reduction <add>, %221, %cst_74 [1] : vector<1x128xf32> to vector<1xf32>
    %223 = vector.shape_cast %222 : vector<1xf32> to vector<1x1xf32>
    %cst_75 = arith.constant 5.000000e-03 : f32
    %224 = vector.broadcast %cst_75 : f32 to vector<1x1xf32>
    %225 = arith.mulf %224, %223 : vector<1x1xf32>
    %226 = tpu.reciprocal %225 {approx = true} : vector<1x1xf32> -> vector<1x1xf32>
    %227 = arith.mulf %225, %226 : vector<1x1xf32>
    %cst_76 = arith.constant 2.000000e+00 : f32
    %228 = vector.broadcast %cst_76 : f32 to vector<1x1xf32>
    %229 = arith.subf %228, %227 : vector<1x1xf32>
    %230 = arith.mulf %226, %229 : vector<1x1xf32>
    %231 = vector.broadcast %230 : vector<1x1xf32> to vector<1x128xf32>
    %232 = arith.mulf %221, %231 : vector<1x128xf32>
    %233 = arith.truncf %232 : vector<1x128xf32> to vector<1x128xbf16>
    %cst_77 = arith.constant dense<0.000000e+00> : vector<1x128xf32>
    %234 = tpu.matmul %233, %0, %cst_77 {dimension_numbers = #tpu.dot_dimension_numbers<[1], [0], [0], [1], [0, 0, 1, 1], [], []>} : vector<1x128xbf16>, vector<128x128xbf16>, vector<1x128xf32> -> vector<1x128xf32>
    %cst_78 = arith.constant 1.000000e+00 : f32
    %235 = vector.broadcast %cst_78 : f32 to vector<1x128xf32>
    %236 = arith.mulf %235, %234 : vector<1x128xf32>
    %237 = arith.addf %236, %3 : vector<1x128xf32>
    %cst_79 = arith.constant 2.000000e-01 : f32
    %238 = vector.broadcast %cst_79 : f32 to vector<1x128xf32>
    %239 = arith.mulf %238, %237 : vector<1x128xf32>
    %240 = arith.mulf %239, %239 : vector<1x128xf32>
    %cst_80 = arith.constant dense<0.000000e+00> : vector<1xf32>
    %241 = vector.multi_reduction <add>, %240, %cst_80 [1] : vector<1x128xf32> to vector<1xf32>
    %242 = vector.shape_cast %241 : vector<1xf32> to vector<1x1xf32>
    %cst_81 = arith.constant 5.000000e-03 : f32
    %243 = vector.broadcast %cst_81 : f32 to vector<1x1xf32>
    %244 = arith.mulf %243, %242 : vector<1x1xf32>
    %245 = tpu.reciprocal %244 {approx = true} : vector<1x1xf32> -> vector<1x1xf32>
    %246 = arith.mulf %244, %245 : vector<1x1xf32>
    %cst_82 = arith.constant 2.000000e+00 : f32
    %247 = vector.broadcast %cst_82 : f32 to vector<1x1xf32>
    %248 = arith.subf %247, %246 : vector<1x1xf32>
    %249 = arith.mulf %245, %248 : vector<1x1xf32>
    %250 = vector.broadcast %249 : vector<1x1xf32> to vector<1x128xf32>
    %251 = arith.mulf %240, %250 : vector<1x128xf32>
    %252 = arith.truncf %251 : vector<1x128xf32> to vector<1x128xbf16>
    %cst_83 = arith.constant dense<0.000000e+00> : vector<1x128xf32>
    %253 = tpu.matmul %252, %0, %cst_83 {dimension_numbers = #tpu.dot_dimension_numbers<[1], [0], [0], [1], [0, 0, 1, 1], [], []>} : vector<1x128xbf16>, vector<128x128xbf16>, vector<1x128xf32> -> vector<1x128xf32>
    %cst_84 = arith.constant 1.000000e+00 : f32
    %254 = vector.broadcast %cst_84 : f32 to vector<1x128xf32>
    %255 = arith.mulf %254, %253 : vector<1x128xf32>
    %256 = arith.addf %255, %3 : vector<1x128xf32>
    %cst_85 = arith.constant 2.000000e-01 : f32
    %257 = vector.broadcast %cst_85 : f32 to vector<1x128xf32>
    %258 = arith.mulf %257, %256 : vector<1x128xf32>
    %259 = arith.mulf %258, %258 : vector<1x128xf32>
    %cst_86 = arith.constant dense<0.000000e+00> : vector<1xf32>
    %260 = vector.multi_reduction <add>, %259, %cst_86 [1] : vector<1x128xf32> to vector<1xf32>
    %261 = vector.shape_cast %260 : vector<1xf32> to vector<1x1xf32>
    %cst_87 = arith.constant 5.000000e-03 : f32
    %262 = vector.broadcast %cst_87 : f32 to vector<1x1xf32>
    %263 = arith.mulf %262, %261 : vector<1x1xf32>
    %264 = tpu.reciprocal %263 {approx = true} : vector<1x1xf32> -> vector<1x1xf32>
    %265 = arith.mulf %263, %264 : vector<1x1xf32>
    %cst_88 = arith.constant 2.000000e+00 : f32
    %266 = vector.broadcast %cst_88 : f32 to vector<1x1xf32>
    %267 = arith.subf %266, %265 : vector<1x1xf32>
    %268 = arith.mulf %264, %267 : vector<1x1xf32>
    %269 = vector.broadcast %268 : vector<1x1xf32> to vector<1x128xf32>
    %270 = arith.mulf %259, %269 : vector<1x128xf32>
    %c0_89 = arith.constant 0 : index
    %c0_90 = arith.constant 0 : index
    %271 = vector.load %arg3[%c0_89, %c0_90] : memref<1x128xf32, #tpu.memory_space<vmem>>, vector<1x128xf32>
    tpu.vector_store %arg3[%c0_89, %c0_90], %256 {strides = array<i32>} : memref<1x128xf32, #tpu.memory_space<vmem>>, vector<1x128xf32>,
    %c0_91 = arith.constant 0 : index
    %c0_92 = arith.constant 0 : index
    %272 = vector.load %arg4[%c0_91, %c0_92] : memref<1x1xf32, #tpu.memory_space<vmem>>, vector<1x1xf32>
    tpu.vector_store %arg4[%c0_91, %c0_92], %263 {strides = array<i32>} : memref<1x1xf32, #tpu.memory_space<vmem>>, vector<1x1xf32>,
    %c0_93 = arith.constant 0 : index
    %c0_94 = arith.constant 0 : index
    %273 = vector.load %arg5[%c0_93, %c0_94] : memref<1x128xf32, #tpu.memory_space<vmem>>, vector<1x128xf32>
    tpu.vector_store %arg5[%c0_93, %c0_94], %270 {strides = array<i32>} : memref<1x128xf32, #tpu.memory_space<vmem>>, vector<1x128xf32>,
    return
  }
}

</mosaic_0001>

<llo_original>
// kernel: tpu_custom_call.1
$region0: #{tpu_custom_call.1}
  #allocation0 [shape = 'u32[]', space=smem, size = 0x4, offset = 0x4, fixed_abs, tag = 'smem constant byte address 0x4 - core index']
  #allocation1 [shape = 'u32[72,128]{1,0:T(1,128)}', space=vmem, size = 0x9000, scoped, tag = 'internal scratch']
  %s0 = inlined_call_operand.hbm [shape: bf16[128,128], index: 0, kind: input, shape index: {}]
  %s1 = inlined_call_operand.hbm [shape: f32[1,128], index: 1, kind: input, shape index: {}]
  %s2 = inlined_call_operand.vmem [shape: f32[1,128], index: 2, kind: input, shape index: {}]
  %s3 = inlined_call_operand.hbm [shape: f32[1,128], index: 3, kind: output, shape index: {0}]
  %s4 = inlined_call_operand.hbm [shape: f32[1,1], index: 4, kind: output, shape index: {1}]
  %s5 = inlined_call_operand.hbm [shape: f32[1,128], index: 5, kind: output, shape index: {2}]
  %6 = xla_tuple %s3, %s4, %s5
  %s7 = sld [smem:[#allocation0]]
  $region46: #{tpu_custom_call.1} parent=0
    _
  %s9 = ssub.s32 1, %s7
  %s10 = scalar_select 0, %s9, %s7
  $region1: #{tpu_custom_call.1} parent=0
    #allocation2 [shape = 'u8[32768]{0}', space=vmem, size = 0x8000, scoped, tag = 'input window, operand 0, single buffered']
    #allocation3 [shape = 's32[1]{0}', space=sflag, size = 0x4, scoped, tag = 'scoped memory for tpu_custom_call.1']
    #allocation4 [shape = 's32[1]{0}', space=sflag, size = 0x4, scoped, tag = 'scoped memory for tpu_custom_call.1']
    #allocation5 [shape = 'u8[512]{0}', space=vmem, size = 0x400, scoped, tag = 'input window, operand 1, single buffered']
    #allocation6 [shape = 's32[1]{0}', space=sflag, size = 0x4, scoped, tag = 'scoped memory for tpu_custom_call.1']
    #allocation7 [shape = 'u8[512]{0}', space=vmem, size = 0x400, scoped, tag = 'output window, operand 0, single buffered']
    #allocation8 [shape = 'u8[512]{0}', space=vmem, size = 0x400, scoped, tag = 'output window, operand 1, single buffered']
    #allocation9 [shape = 's32[1]{0}', space=sflag, size = 0x4, scoped, tag = 'scoped memory for tpu_custom_call.1']
    #allocation10 [shape = 'u8[512]{0}', space=vmem, size = 0x400, scoped, tag = 'output window, operand 2, single buffered']
    %11 = vsyncpa [#allocation3], 0
    %12 = vsyncpa [#allocation6], 0
    %13 = vsyncpa [#allocation4], 0
    %14 = vsyncpa [#allocation9], 0
    // Predicated region
    $region2: #{tpu_custom_call.1} parent=1 // pred_check
      _
    $region3: #{tpu_custom_call.1} parent=1 // pred_check_branch
      %16 = sbr.rel (0) target = $region5
    $region4: #{tpu_custom_call.1} parent=1 // pred_region
      %18 = vsyncadd [#allocation3], 0
      %s19 = sshll.u32 %s0, 4
      %s20 = int_to_ptr.hbm [resolvable:$true] %s19
      %s21 = sshll.u32 [#allocation2], 4
      %s22 = int_to_ptr.vmem [resolvable:$true] %s21
      %27 = dma.hbm_to_vmem [thread:$0]  %s20, 1024, %s22, [#allocation3], 64, 64, 4
    $region5: #{tpu_custom_call.1} parent=1 // pred_fallthru
      _
    // Predicated region
    $region6: #{tpu_custom_call.1} parent=1 // pred_check
      _
    $region7: #{tpu_custom_call.1} parent=1 // pred_check_branch
      %29 = sbr.rel (0) target = $region9
    $region8: #{tpu_custom_call.1} parent=1 // pred_region
      %31 = vsyncadd [#allocation6], 0
      %s33 = sshll.u32 %s1, 4
      %s34 = int_to_ptr.hbm [resolvable:$true] %s33
      %s35 = sshll.u32 [#allocation5], 4
      %s36 = int_to_ptr.vmem [resolvable:$true] %s35
      %38 = dma.hbm_to_vmem [thread:$0]  %s34, 16, %s36, [#allocation6]
    $region9: #{tpu_custom_call.1} parent=1 // pred_fallthru
      _
    // Predicated region
    $region10: #{tpu_custom_call.1} parent=1 // pred_check
      _
    $region11: #{tpu_custom_call.1} parent=1 // pred_check_branch
      %40 = sbr.rel (0) target = $region13
    $region12: #{tpu_custom_call.1} parent=1 // pred_region
      _
    $region13: #{tpu_custom_call.1} parent=1 // pred_fallthru
      _
    // Predicated region
    $region14: #{tpu_custom_call.1} parent=1 // pred_check
      _
    $region15: #{tpu_custom_call.1} parent=1 // pred_check_branch
      %42 = sbr.rel (0) target = $region17
    $region16: #{tpu_custom_call.1} parent=1 // pred_region
      %44 = dma.done [#allocation3], 1024
    $region17: #{tpu_custom_call.1} parent=1 // pred_fallthru
      _
    // Predicated region
    $region18: #{tpu_custom_call.1} parent=1 // pred_check
      _
    $region19: #{tpu_custom_call.1} parent=1 // pred_check_branch
      %46 = sbr.rel (0) target = $region21
    $region20: #{tpu_custom_call.1} parent=1 // pred_region
      %48 = dma.done [#allocation6], 16
    $region21: #{tpu_custom_call.1} parent=1 // pred_fallthru
      _
    %v49 = vld [vmem:[#allocation2] sm:$0xf]
    %v50 = vld [vmem:[#allocation2 + $0x4] sm:$0xf]
    %v51 = vld [vmem:[#allocation2 + $0x8] sm:$0xf]
    %v52 = vld [vmem:[#allocation2 + $0xc] sm:$0xf]
    %v53 = vld [vmem:[#allocation2 + $0x10] sm:$0xf]
    %v54 = vld [vmem:[#allocation2 + $0x14] sm:$0xf]
    %v55 = vld [vmem:[#allocation2 + $0x18] sm:$0xf]
    %v56 = vld [vmem:[#allocation2 + $0x1c] sm:$0xf]
    %v57 = vld [vmem:[#allocation2 + $0x20] sm:$0xf]
    %v58 = vld [vmem:[#allocation2 + $0x24] sm:$0xf]
    %v59 = vld [vmem:[#allocation2 + $0x28] sm:$0xf]
    %v60 = vld [vmem:[#allocation2 + $0x2c] sm:$0xf]
    %v61 = vld [vmem:[#allocation2 + $0x30] sm:$0xf]
    %v62 = vld [vmem:[#allocation2 + $0x34] sm:$0xf]
    %v63 = vld [vmem:[#allocation2 + $0x38] sm:$0xf]
    %v64 = vld [vmem:[#allocation2 + $0x3c] sm:$0xf]
    %v65 = vld [vmem:[#allocation5] sm:$0x1]
    %v66 = vld [vmem:[%s2] sm:$0x1]
    %v67 = vpack.c.bf16 %v66, %v66
    %v84 = vunpack.c.l.b16 %v49
    %v85 = vunpack.c.l.b16 %v50
    %v86 = vunpack.c.l.b16 %v51
    %v87 = vunpack.c.l.b16 %v52
    %v88 = vunpack.c.l.b16 %v53
    %v89 = vunpack.c.l.b16 %v54
    %v90 = vunpack.c.l.b16 %v55
    %v91 = vunpack.c.l.b16 %v56
    %v92 = vunpack.c.l.b16 %v57
    %v93 = vunpack.c.l.b16 %v58
    %v94 = vunpack.c.l.b16 %v59
    %v95 = vunpack.c.l.b16 %v60
    %v96 = vunpack.c.l.b16 %v61
    %v97 = vunpack.c.l.b16 %v62
    %v98 = vunpack.c.l.b16 %v63
    %v99 = vunpack.c.l.b16 %v64
    %v100 = vpack.c.b16 %v85, %v84
    %v101 = vpack.c.b16 %v87, %v86
    %v102 = vpack.c.b16 %v89, %v88
    %v103 = vpack.c.b16 %v91, %v90
    %v104 = vpack.c.b16 %v93, %v92
    %v105 = vpack.c.b16 %v95, %v94
    %v106 = vpack.c.b16 %v97, %v96
    %v107 = vpack.c.b16 %v99, %v98
    %116 = vmatpush.bf16.msra.mxu0 %v107
    %117 = vmatpush.bf16.msra.mxu0 %v106
    %118 = vmatpush.bf16.msra.mxu0 %v105
    %119 = vmatpush.bf16.msra.mxu0 %v104
    %120 = vmatpush.bf16.msra.mxu0 %v103
    %121 = vmatpush.bf16.msra.mxu0 %v102
    %122 = vmatpush.bf16.msra.mxu0 %v101
    %123 = vmatpush.bf16.msra.mxu0 %v100
    %124 = vmatmul.bf16.gmra.mxu0 %v67
    %v125 = vpop.f32.mrf.mxu0
    %v126 = vadd.f32 %v65, %v125
    %v127 = vpop.f32.mrf.mxu0
    %128 = vdwg.mxu0
    %v129 = vmul.f32 %v126, 0.2
    %v130 = vmul.f32 %v129, %v129
    %vm131 = vcmask 1040384
    %v132 = vsel %vm131, %v130, 0.0
    %133 = vadd.xlane.f32.xlu0 %v132
    %v134 = vpop.xlane.xlu0 %133
    %v135 = vmul.f32 %v134, 0.005
    %v136 = vrcp.pop %v135
    %v137 = vmul.f32 %v135, %v136
    %v138 = vsub.f32 2.0, %v137
    %v139 = vmul.f32 %v136, %v138
    %v140 = vmul.f32 %v130, %v139
    %v141 = vpack.c.bf16 %v140, %v140
    %142 = vmatpush.bf16.msra.mxu0 %v107
    %143 = vmatpush.bf16.msra.mxu0 %v106
    %144 = vmatpush.bf16.msra.mxu0 %v105
    %145 = vmatpush.bf16.msra.mxu0 %v104
    %146 = vmatpush.bf16.msra.mxu0 %v103
    %147 = vmatpush.bf16.msra.mxu0 %v102
    %148 = vmatpush.bf16.msra.mxu0 %v101
    %149 = vmatpush.bf16.msra.mxu0 %v100
    %150 = vmatmul.bf16.gmra.mxu0 %v141
    %v151 = vpop.f32.mrf.mxu0
    %v152 = vadd.f32 %v65, %v151
    %v153 = vpop.f32.mrf.mxu0
    %154 = vdwg.mxu0
    %v155 = vmul.f32 %v152, 0.2
    %v156 = vmul.f32 %v155, %v155
    %v157 = vsel %vm131, %v156, 0.0
    %158 = vadd.xlane.f32.xlu0 %v157
    %v159 = vpop.xlane.xlu0 %158
    %v160 = vmul.f32 %v159, 0.005
    %v161 = vrcp.pop %v160
    %v162 = vmul.f32 %v160, %v161
    %v163 = vsub.f32 2.0, %v162
    %v164 = vmul.f32 %v161, %v163
    %v165 = vmul.f32 %v156, %v164
    %v166 = vpack.c.bf16 %v165, %v165
    %167 = vmatpush.bf16.msra.mxu0 %v107
    %168 = vmatpush.bf16.msra.mxu0 %v106
    %169 = vmatpush.bf16.msra.mxu0 %v105
    %170 = vmatpush.bf16.msra.mxu0 %v104
    %171 = vmatpush.bf16.msra.mxu0 %v103
    %172 = vmatpush.bf16.msra.mxu0 %v102
    %173 = vmatpush.bf16.msra.mxu0 %v101
    %174 = vmatpush.bf16.msra.mxu0 %v100
    %175 = vmatmul.bf16.gmra.mxu0 %v166
    %v176 = vpop.f32.mrf.mxu0
    %v177 = vadd.f32 %v65, %v176
    %v178 = vpop.f32.mrf.mxu0
    %179 = vdwg.mxu0
    %v180 = vmul.f32 %v177, 0.2
    %v181 = vmul.f32 %v180, %v180
    %v182 = vsel %vm131, %v181, 0.0
    %183 = vadd.xlane.f32.xlu0 %v182
    %v184 = vpop.xlane.xlu0 %183
    %v185 = vmul.f32 %v184, 0.005
    %v186 = vrcp.pop %v185
    %v187 = vmul.f32 %v185, %v186
    %v188 = vsub.f32 2.0, %v187
    %v189 = vmul.f32 %v186, %v188
    %v190 = vmul.f32 %v181, %v189
    %v191 = vpack.c.bf16 %v190, %v190
    %192 = vmatpush.bf16.msra.mxu0 %v107
    %193 = vmatpush.bf16.msra.mxu0 %v106
    %194 = vmatpush.bf16.msra.mxu0 %v105
    %195 = vmatpush.bf16.msra.mxu0 %v104
    %196 = vmatpush.bf16.msra.mxu0 %v103
    %197 = vmatpush.bf16.msra.mxu0 %v102
    %198 = vmatpush.bf16.msra.mxu0 %v101
    %199 = vmatpush.bf16.msra.mxu0 %v100
    %200 = vmatmul.bf16.gmra.mxu0 %v191
    %v201 = vpop.f32.mrf.mxu0
    %v202 = vadd.f32 %v65, %v201
    %v203 = vpop.f32.mrf.mxu0
    %204 = vdwg.mxu0
    %v205 = vmul.f32 %v202, 0.2
    %v206 = vmul.f32 %v205, %v205
    %v207 = vsel %vm131, %v206, 0.0
    %208 = vadd.xlane.f32.xlu0 %v207
    %v209 = vpop.xlane.xlu0 %208
    %v210 = vmul.f32 %v209, 0.005
    %v211 = vrcp.pop %v210
    %v212 = vmul.f32 %v210, %v211
    %v213 = vsub.f32 2.0, %v212
    %v214 = vmul.f32 %v211, %v213
    %v215 = vmul.f32 %v206, %v214
    %v216 = vpack.c.bf16 %v215, %v215
    %217 = vmatpush.bf16.msra.mxu0 %v107
    %218 = vmatpush.bf16.msra.mxu0 %v106
    %219 = vmatpush.bf16.msra.mxu0 %v105
    %220 = vmatpush.bf16.msra.mxu0 %v104
    %221 = vmatpush.bf16.msra.mxu0 %v103
    %222 = vmatpush.bf16.msra.mxu0 %v102
    %223 = vmatpush.bf16.msra.mxu0 %v101
    %224 = vmatpush.bf16.msra.mxu0 %v100
    %225 = vmatmul.bf16.gmra.mxu0 %v216
    %v226 = vpop.f32.mrf.mxu0
    %v227 = vadd.f32 %v65, %v226
    %v228 = vpop.f32.mrf.mxu0
    %229 = vdwg.mxu0
    %v230 = vmul.f32 %v227, 0.2
    %v231 = vmul.f32 %v230, %v230
    %v232 = vsel %vm131, %v231, 0.0
    %233 = vadd.xlane.f32.xlu0 %v232
    %v234 = vpop.xlane.xlu0 %233
    %v235 = vmul.f32 %v234, 0.005
    %v236 = vrcp.pop %v235
    %v237 = vmul.f32 %v235, %v236
    %v238 = vsub.f32 2.0, %v237
    %v239 = vmul.f32 %v236, %v238
    %v240 = vmul.f32 %v231, %v239
    %v241 = vpack.c.bf16 %v240, %v240
    %242 = vmatpush.bf16.msra.mxu0 %v107
    %243 = vmatpush.bf16.msra.mxu0 %v106
    %244 = vmatpush.bf16.msra.mxu0 %v105
    %245 = vmatpush.bf16.msra.mxu0 %v104
    %246 = vmatpush.bf16.msra.mxu0 %v103
    %247 = vmatpush.bf16.msra.mxu0 %v102
    %248 = vmatpush.bf16.msra.mxu0 %v101
    %249 = vmatpush.bf16.msra.mxu0 %v100
    %250 = vmatmul.bf16.gmra.mxu0 %v241
    %v251 = vpop.f32.mrf.mxu0
    %v252 = vadd.f32 %v65, %v251
    %v253 = vpop.f32.mrf.mxu0
    %254 = vdwg.mxu0
    %v255 = vmul.f32 %v252, 0.2
    %v256 = vmul.f32 %v255, %v255
    %v257 = vsel %vm131, %v256, 0.0
    %258 = vadd.xlane.f32.xlu0 %v257
    %v259 = vpop.xlane.xlu0 %258
    %v260 = vmul.f32 %v259, 0.005
    %v261 = vrcp.pop %v260
    %v262 = vmul.f32 %v260, %v261
    %v263 = vsub.f32 2.0, %v262
    %v264 = vmul.f32 %v261, %v263
    %v265 = vmul.f32 %v256, %v264
    %v266 = vpack.c.bf16 %v265, %v265
    %267 = vmatpush.bf16.msra.mxu0 %v107
    %268 = vmatpush.bf16.msra.mxu0 %v106
    %269 = vmatpush.bf16.msra.mxu0 %v105
    %270 = vmatpush.bf16.msra.mxu0 %v104
    %271 = vmatpush.bf16.msra.mxu0 %v103
    %272 = vmatpush.bf16.msra.mxu0 %v102
    %273 = vmatpush.bf16.msra.mxu0 %v101
    %274 = vmatpush.bf16.msra.mxu0 %v100
    %275 = vmatmul.bf16.gmra.mxu0 %v266
    %v276 = vpop.f32.mrf.mxu0
    %v277 = vadd.f32 %v65, %v276
    %v278 = vpop.f32.mrf.mxu0
    %279 = vdwg.mxu0
    %v280 = vmul.f32 %v277, 0.2
    %v281 = vmul.f32 %v280, %v280
    %v282 = vsel %vm131, %v281, 0.0
    %283 = vadd.xlane.f32.xlu0 %v282
    %v284 = vpop.xlane.xlu0 %283
    %v285 = vmul.f32 %v284, 0.005
    %v286 = vrcp.pop %v285
    %v287 = vmul.f32 %v285, %v286
    %v288 = vsub.f32 2.0, %v287
    %v289 = vmul.f32 %v286, %v288
    %v290 = vmul.f32 %v281, %v289
    %v291 = vpack.c.bf16 %v290, %v290
    %292 = vmatpush.bf16.msra.mxu0 %v107
    %293 = vmatpush.bf16.msra.mxu0 %v106
    %294 = vmatpush.bf16.msra.mxu0 %v105
    %295 = vmatpush.bf16.msra.mxu0 %v104
    %296 = vmatpush.bf16.msra.mxu0 %v103
    %297 = vmatpush.bf16.msra.mxu0 %v102
    %298 = vmatpush.bf16.msra.mxu0 %v101
    %299 = vmatpush.bf16.msra.mxu0 %v100
    %300 = vmatmul.bf16.gmra.mxu0 %v291
    %v301 = vpop.f32.mrf.mxu0
    %v302 = vadd.f32 %v65, %v301
    %v303 = vpop.f32.mrf.mxu0
    %304 = vdwg.mxu0
    %v305 = vmul.f32 %v302, 0.2
    %v306 = vmul.f32 %v305, %v305
    %v307 = vsel %vm131, %v306, 0.0
    %308 = vadd.xlane.f32.xlu0 %v307
    %v309 = vpop.xlane.xlu0 %308
    %v310 = vmul.f32 %v309, 0.005
    %v311 = vrcp.pop %v310
    %v312 = vmul.f32 %v310, %v311
    %v313 = vsub.f32 2.0, %v312
    %v314 = vmul.f32 %v311, %v313
    %v315 = vmul.f32 %v306, %v314
    %v316 = vpack.c.bf16 %v315, %v315
    %317 = vmatpush.bf16.msra.mxu0 %v107
    %318 = vmatpush.bf16.msra.mxu0 %v106
    %319 = vmatpush.bf16.msra.mxu0 %v105
    %320 = vmatpush.bf16.msra.mxu0 %v104
    %321 = vmatpush.bf16.msra.mxu0 %v103
    %322 = vmatpush.bf16.msra.mxu0 %v102
    %323 = vmatpush.bf16.msra.mxu0 %v101
    %324 = vmatpush.bf16.msra.mxu0 %v100
    %325 = vmatmul.bf16.gmra.mxu0 %v316
    %v326 = vpop.f32.mrf.mxu0
    %v327 = vadd.f32 %v65, %v326
    %v328 = vpop.f32.mrf.mxu0
    %329 = vdwg.mxu0
    %v330 = vmul.f32 %v327, 0.2
    %v331 = vmul.f32 %v330, %v330
    %v332 = vsel %vm131, %v331, 0.0
    %333 = vadd.xlane.f32.xlu0 %v332
    %v334 = vpop.xlane.xlu0 %333
    %v335 = vmul.f32 %v334, 0.005
    %v336 = vrcp.pop %v335
    %v337 = vmul.f32 %v335, %v336
    %v338 = vsub.f32 2.0, %v337
    %v339 = vmul.f32 %v336, %v338
    %v340 = vmul.f32 %v331, %v339
    %v341 = vpack.c.bf16 %v340, %v340
    %342 = vmatpush.bf16.msra.mxu0 %v107
    %343 = vmatpush.bf16.msra.mxu0 %v106
    %344 = vmatpush.bf16.msra.mxu0 %v105
    %345 = vmatpush.bf16.msra.mxu0 %v104
    %346 = vmatpush.bf16.msra.mxu0 %v103
    %347 = vmatpush.bf16.msra.mxu0 %v102
    %348 = vmatpush.bf16.msra.mxu0 %v101
    %349 = vmatpush.bf16.msra.mxu0 %v100
    %350 = vmatmul.bf16.gmra.mxu0 %v341
    %v351 = vpop.f32.mrf.mxu0
    %v352 = vadd.f32 %v65, %v351
    %v353 = vpop.f32.mrf.mxu0
    %354 = vdwg.mxu0
    %v355 = vmul.f32 %v352, 0.2
    %v356 = vmul.f32 %v355, %v355
    %v357 = vsel %vm131, %v356, 0.0
    %358 = vadd.xlane.f32.xlu0 %v357
    %v359 = vpop.xlane.xlu0 %358
    %v360 = vmul.f32 %v359, 0.005
    %v361 = vrcp.pop %v360
    %v362 = vmul.f32 %v360, %v361
    %v363 = vsub.f32 2.0, %v362
    %v364 = vmul.f32 %v361, %v363
    %v365 = vmul.f32 %v356, %v364
    %v366 = vpack.c.bf16 %v365, %v365
    %367 = vmatpush.bf16.msra.mxu0 %v107
    %368 = vmatpush.bf16.msra.mxu0 %v106
    %369 = vmatpush.bf16.msra.mxu0 %v105
    %370 = vmatpush.bf16.msra.mxu0 %v104
    %371 = vmatpush.bf16.msra.mxu0 %v103
    %372 = vmatpush.bf16.msra.mxu0 %v102
    %373 = vmatpush.bf16.msra.mxu0 %v101
    %374 = vmatpush.bf16.msra.mxu0 %v100
    %375 = vmatmul.bf16.gmra.mxu0 %v366
    %v376 = vpop.f32.mrf.mxu0
    %v377 = vadd.f32 %v65, %v376
    %v378 = vpop.f32.mrf.mxu0
    %379 = vdwg.mxu0
    %v380 = vmul.f32 %v377, 0.2
    %v381 = vmul.f32 %v380, %v380
    %v382 = vsel %vm131, %v381, 0.0
    %383 = vadd.xlane.f32.xlu0 %v382
    %v384 = vpop.xlane.xlu0 %383
    %v385 = vmul.f32 %v384, 0.005
    %v386 = vrcp.pop %v385
    %v387 = vmul.f32 %v385, %v386
    %v388 = vsub.f32 2.0, %v387
    %v389 = vmul.f32 %v386, %v388
    %v390 = vmul.f32 %v381, %v389
    %v391 = vpack.c.bf16 %v390, %v390
    %392 = vmatpush.bf16.msra.mxu0 %v107
    %393 = vmatpush.bf16.msra.mxu0 %v106
    %394 = vmatpush.bf16.msra.mxu0 %v105
    %395 = vmatpush.bf16.msra.mxu0 %v104
    %396 = vmatpush.bf16.msra.mxu0 %v103
    %397 = vmatpush.bf16.msra.mxu0 %v102
    %398 = vmatpush.bf16.msra.mxu0 %v101
    %399 = vmatpush.bf16.msra.mxu0 %v100
    %400 = vmatmul.bf16.gmra.mxu0 %v391
    %v401 = vpop.f32.mrf.mxu0
    %v402 = vadd.f32 %v65, %v401
    %v403 = vpop.f32.mrf.mxu0
    %404 = vdwg.mxu0
    %v405 = vmul.f32 %v402, 0.2
    %v406 = vmul.f32 %v405, %v405
    %v407 = vsel %vm131, %v406, 0.0
    %408 = vadd.xlane.f32.xlu0 %v407
    %v409 = vpop.xlane.xlu0 %408
    %v410 = vmul.f32 %v409, 0.005
    %v411 = vrcp.pop %v410
    %v412 = vmul.f32 %v410, %v411
    %v413 = vsub.f32 2.0, %v412
    %v414 = vmul.f32 %v411, %v413
    %v415 = vmul.f32 %v406, %v414
    %v416 = vpack.c.bf16 %v415, %v415
    %417 = vmatpush.bf16.msra.mxu0 %v107
    %418 = vmatpush.bf16.msra.mxu0 %v106
    %419 = vmatpush.bf16.msra.mxu0 %v105
    %420 = vmatpush.bf16.msra.mxu0 %v104
    %421 = vmatpush.bf16.msra.mxu0 %v103
    %422 = vmatpush.bf16.msra.mxu0 %v102
    %423 = vmatpush.bf16.msra.mxu0 %v101
    %424 = vmatpush.bf16.msra.mxu0 %v100
    %425 = vmatmul.bf16.gmra.mxu0 %v416
    %v426 = vpop.f32.mrf.mxu0
    %v427 = vadd.f32 %v65, %v426
    %v428 = vpop.f32.mrf.mxu0
    %429 = vdwg.mxu0
    %v430 = vmul.f32 %v427, 0.2
    %v431 = vmul.f32 %v430, %v430
    %v432 = vsel %vm131, %v431, 0.0
    %433 = vadd.xlane.f32.xlu0 %v432
    %v434 = vpop.xlane.xlu0 %433
    %v435 = vmul.f32 %v434, 0.005
    %v436 = vrcp.pop %v435
    %v437 = vmul.f32 %v435, %v436
    %v438 = vsub.f32 2.0, %v437
    %v439 = vmul.f32 %v436, %v438
    %v440 = vmul.f32 %v431, %v439
    %v441 = vpack.c.bf16 %v440, %v440
    %442 = vmatpush.bf16.msra.mxu0 %v107
    %443 = vmatpush.bf16.msra.mxu0 %v106
    %444 = vmatpush.bf16.msra.mxu0 %v105
    %445 = vmatpush.bf16.msra.mxu0 %v104
    %446 = vmatpush.bf16.msra.mxu0 %v103
    %447 = vmatpush.bf16.msra.mxu0 %v102
    %448 = vmatpush.bf16.msra.mxu0 %v101
    %449 = vmatpush.bf16.msra.mxu0 %v100
    %450 = vmatmul.bf16.gmra.mxu0 %v441
    %v451 = vpop.f32.mrf.mxu0
    %v452 = vadd.f32 %v65, %v451
    %v453 = vpop.f32.mrf.mxu0
    %454 = vdwg.mxu0
    %v455 = vmul.f32 %v452, 0.2
    %v456 = vmul.f32 %v455, %v455
    %v457 = vsel %vm131, %v456, 0.0
    %458 = vadd.xlane.f32.xlu0 %v457
    %v459 = vpop.xlane.xlu0 %458
    %v460 = vmul.f32 %v459, 0.005
    %v461 = vrcp.pop %v460
    %v462 = vmul.f32 %v460, %v461
    %v463 = vsub.f32 2.0, %v462
    %v464 = vmul.f32 %v461, %v463
    %v465 = vmul.f32 %v456, %v464
    %466 = vst [vmem:[#allocation7] sm:$0x1] %v452
    %vm467 = vcmask 0
    %468 = vst.msk [vmem:[#allocation8] sm:$0x1] %vm467, %v460
    %469 = vst [vmem:[#allocation10] sm:$0x1] %v465
    // Predicated region
    $region22: #{tpu_custom_call.1} parent=1 // pred_check
      _
    $region23: #{tpu_custom_call.1} parent=1 // pred_check_branch
      %471 = sbr.rel (0) target = $region25
    $region24: #{tpu_custom_call.1} parent=1 // pred_region
      %473 = vsyncadd [#allocation4], 0
      %s475 = sshll.u32 [#allocation7], 4
      %s476 = int_to_ptr.vmem [resolvable:$true] %s475
      %s477 = sshll.u32 %s3, 4
      %s478 = int_to_ptr.hbm [resolvable:$true] %s477
      %480 = dma.vmem_to_hbm [thread:$0]  %s476, 16, %s478, [#allocation4]
    $region25: #{tpu_custom_call.1} parent=1 // pred_fallthru
      _
    // Predicated region
    $region26: #{tpu_custom_call.1} parent=1 // pred_check
      _
    $region27: #{tpu_custom_call.1} parent=1 // pred_check_branch
      %482 = sbr.rel (0) target = $region29
    $region28: #{tpu_custom_call.1} parent=1 // pred_region
      %484 = vsyncadd [#allocation9], 0
      %s486 = sshll.u32 [#allocation8], 4
      %s487 = int_to_ptr.vmem [resolvable:$true] %s486
      %s488 = sshll.u32 %s4, 4
      %s489 = int_to_ptr.hbm [resolvable:$true] %s488
      %491 = dma.vmem_to_hbm [thread:$0]  %s487, 16, %s489, [#allocation9]
    $region29: #{tpu_custom_call.1} parent=1 // pred_fallthru
      _
    // Predicated region
    $region30: #{tpu_custom_call.1} parent=1 // pred_check
      _
    $region31: #{tpu_custom_call.1} parent=1 // pred_check_branch
      %493 = sbr.rel (0) target = $region33
    $region32: #{tpu_custom_call.1} parent=1 // pred_region
      %495 = vsyncadd [#allocation9], 0
      %s497 = sshll.u32 [#allocation10], 4
      %s498 = int_to_ptr.vmem [resolvable:$true] %s497
      %s499 = sshll.u32 %s5, 4
      %s500 = int_to_ptr.hbm [resolvable:$true] %s499
      %502 = dma.vmem_to_hbm [thread:$0]  %s498, 16, %s500, [#allocation9]
    $region33: #{tpu_custom_call.1} parent=1 // pred_fallthru
      _
    // Predicated region
    $region34: #{tpu_custom_call.1} parent=1 // pred_check
      _
    $region35: #{tpu_custom_call.1} parent=1 // pred_check_branch
      %504 = sbr.rel (0) target = $region37
    $region36: #{tpu_custom_call.1} parent=1 // pred_region
      %506 = dma.done [#allocation4], 16
    $region37: #{tpu_custom_call.1} parent=1 // pred_fallthru
      _
    // Predicated region
    $region38: #{tpu_custom_call.1} parent=1 // pred_check
      _
    $region39: #{tpu_custom_call.1} parent=1 // pred_check_branch
      %508 = sbr.rel (0) target = $region41
    $region40: #{tpu_custom_call.1} parent=1 // pred_region
      %510 = dma.done [#allocation9], 16
    $region41: #{tpu_custom_call.1} parent=1 // pred_fallthru
      _
    // Predicated region
    $region42: #{tpu_custom_call.1} parent=1 // pred_check
      _
    $region43: #{tpu_custom_call.1} parent=1 // pred_check_branch
      %512 = sbr.rel (0) target = $region45
    $region44: #{tpu_custom_call.1} parent=1 // pred_region
      %514 = dma.done [#allocation9], 16
    $region45: #{tpu_custom_call.1} parent=1 // pred_fallthru
      _
    %515 = vsyncpa [#allocation3], 1
    %516 = vsyncpa [#allocation6], 1
    %517 = vsyncpa [#allocation4], 1
    %518 = vsyncpa [#allocation9], 1

</llo_original>
